<compile_context>
chip_gen: v5e
topology: v5e:2x2
jax: 0.10.0
libtpu: 0.0.40
codegen_flags: <defaults>
</compile_context>

<pallas_src>
import jax
import jax.numpy as jnp
from jax.experimental import pallas as pl
from jax.experimental.pallas import tpu as pltpu


def _ae_kernel(x_ref, we_t_ref, be_ref, wd_t_ref, bd_ref, o_ref):
    # x_ref:    (TB, D_in)   compute dtype (bf16 or f32)
    # we_t_ref: (D_in, H)    encoder weight, pre-transposed
    # be_ref:   (1, H)       encoder bias (f32)
    # wd_t_ref: (H, D_in)    decoder weight, pre-transposed
    # bd_ref:   (1, D_in)    decoder bias (f32)
    # o_ref:    (TB, D_in)
    x = x_ref[...]
    # Encoder matmul on the MXU with f32 accumulation; bias + sigmoid in f32.
    h = jnp.dot(x, we_t_ref[...], preferred_element_type=jnp.float32) + be_ref[...]
    h = jax.nn.sigmoid(h)
    # Downcast activations to the weight dtype so the decoder matmul also runs
    # at the bf16 MXU rate (no-op when compute dtype is f32).
    y = jnp.dot(h.astype(wd_t_ref.dtype), wd_t_ref[...],
                preferred_element_type=jnp.float32) + bd_ref[...]
    o_ref[...] = y.astype(o_ref.dtype)


def _round_up(x, m):
    return ((x + m - 1) // m) * m


def prepare_params(w_enc, b_enc, w_dec, b_dec, compute_dtype=jnp.bfloat16):
    """Hoisted out of the per-call path: transpose/cast the weights once.

    w_enc: (H, D_in), b_enc: (H,), w_dec: (D_in, H), b_dec: (D_in,)
    Matches PyTorch nn.Linear semantics: y = x @ W.T + b.
    """
    we_t = jnp.asarray(w_enc).T.astype(compute_dtype)       # (D_in, H)
    wd_t = jnp.asarray(w_dec).T.astype(compute_dtype)       # (H, D_in)
    be = jnp.asarray(b_enc).reshape(1, -1).astype(jnp.float32)
    bd = jnp.asarray(b_dec).reshape(1, -1).astype(jnp.float32)
    return we_t, be, wd_t, bd


def stacked_autoencoder_forward(x, params, *, tb=None):
    """x: (B, D_in). params: output of prepare_params."""
    we_t, be, wd_t, bd = params
    B, D_in = x.shape
    H = we_t.shape[1]
    compute_dtype = we_t.dtype
    out_dtype = x.dtype

    # Sublane granularity of the batch tile (bf16 packs 16 rows per vreg).
    sub = 16 if compute_dtype == jnp.bfloat16 else 8

    if tb is None:
        if B >= 2 * sub:
            # Large tiles fill the MXU M dimension; aim for >= 2 grid steps so the
            # "parallel" batch axis can be sharded across v7x's two TensorCores.
            tb = min(256, _round_up(-(-B // 2), sub))
        else:
            tb = _round_up(B, sub)
    tb = max(sub, _round_up(tb, sub))

    B_pad = _round_up(B, tb)
    x_in = x.astype(compute_dtype)
    if B_pad != B:
        x_in = jnp.pad(x_in, ((0, B_pad - B), (0, 0)))

    grid = (B_pad // tb,)

    itemsize = jnp.dtype(compute_dtype).itemsize
    cost = pl.CostEstimate(
        flops=2 * 2 * B_pad * D_in * H,                      # two matmuls
        transcendentals=B_pad * H,                           # sigmoid
        bytes_accessed=(B_pad * D_in * itemsize              # x
                        + 2 * D_in * H * itemsize            # both weights
                        + 4 * (H + D_in)                     # biases (f32)
                        + B_pad * D_in * jnp.dtype(out_dtype).itemsize),  # out
    )

    out = pl.pallas_call(
        _ae_kernel,
        out_shape=jax.ShapeDtypeStruct((B_pad, D_in), out_dtype),
        grid_spec=pltpu.PrefetchScalarGridSpec(
            num_scalar_prefetch=0,
            grid=grid,
            in_specs=[
                pl.BlockSpec((tb, D_in), lambda i: (i, 0)),   # x tile (pipelined)
                # Grid-invariant operands (constant index_map): fetched once and
                # held resident in VMEM across the batch loop.
                pl.BlockSpec((D_in, H), lambda i: (0, 0)),    # encoder W^T
                pl.BlockSpec((1, H), lambda i: (0, 0)),       # encoder bias
                pl.BlockSpec((H, D_in), lambda i: (0, 0)),    # decoder W^T
                pl.BlockSpec((1, D_in), lambda i: (0, 0)),    # decoder bias
            ],
            out_specs=pl.BlockSpec((tb, D_in), lambda i: (i, 0)),
        ),
        compiler_params=pltpu.CompilerParams(
            dimension_semantics=("parallel",)),
        cost_estimate=cost,
    )(x_in, we_t, be, wd_t, bd)

    return out[:B] if B_pad != B else out


def _reference(x, w_enc, b_enc, w_dec, b_dec):
    h = jax.nn.sigmoid(x @ w_enc.T + b_enc)
    return h @ w_dec.T + b_dec


if __name__ == "__main__":
    # Shapes consistent with the module: input_size=256, hidden=128, batch=8.
    B, D_IN, HIDDEN = 8, 256, 128

    key = jax.random.PRNGKey(0)
    kx, ke_w, ke_b, kd_w, kd_b = jax.random.split(key, 5)

    # Deterministic init mimicking PyTorch nn.Linear: U(-1/sqrt(fan_in), +1/sqrt(fan_in))
    enc_bound = 1.0 / (D_IN ** 0.5)
    dec_bound = 1.0 / (HIDDEN ** 0.5)
    w_enc = jax.random.uniform(ke_w, (HIDDEN, D_IN), jnp.float32, -enc_bound, enc_bound)
    b_enc = jax.random.uniform(ke_b, (HIDDEN,), jnp.float32, -enc_bound, enc_bound)
    w_dec = jax.random.uniform(kd_w, (D_IN, HIDDEN), jnp.float32, -dec_bound, dec_bound)
    b_dec = jax.random.uniform(kd_b, (D_IN,), jnp.float32, -dec_bound, dec_bound)

    x = jax.random.normal(kx, (B, D_IN), jnp.float32)
    ref = _reference(x, w_enc, b_enc, w_dec, b_dec)

    # f32 path: exact check against the reference.
    params_f32 = prepare_params(w_enc, b_enc, w_dec, b_dec, compute_dtype=jnp.float32)
    out_f32 = jax.block_until_ready(stacked_autoencoder_forward(x, params_f32))
    assert out_f32.shape == (B, D_IN)
    assert jnp.allclose(out_f32, ref, atol=1e-5, rtol=1e-5), "f32 mismatch vs reference"

    # bf16 path (default, MXU headline rate): loose tolerance.
    params_bf16 = prepare_params(w_enc, b_enc, w_dec, b_dec)
    out_bf16 = jax.block_until_ready(stacked_autoencoder_forward(x, params_bf16))
    assert out_bf16.shape == (B, D_IN)
    assert jnp.allclose(out_bf16, ref, atol=3e-2, rtol=3e-2), "bf16 mismatch vs reference"

    # Larger, non-multiple batch: exercises padding + the multi-step parallel grid.
    xb = jax.random.normal(kx, (300, D_IN), jnp.float32)
    refb = _reference(xb, w_enc, b_enc, w_dec, b_dec)
    outb = jax.block_until_ready(stacked_autoencoder_forward(xb, params_bf16))
    assert outb.shape == (300, D_IN)
    assert jnp.allclose(outb, refb, atol=3e-2, rtol=3e-2), "bf16 batched mismatch vs reference"

    print("KERNEL_OK")
</pallas_src>

<mosaic_0001>
module attributes {stable_mosaic.version = 11 : i64} {
  func.func @_ae_kernel(%arg0: i32, %arg1: memref<8x256xf32, #tpu.memory_space<vmem>>, %arg2: memref<256x128xf32, #tpu.memory_space<vmem>>, %arg3: memref<1x128xf32, #tpu.memory_space<vmem>>, %arg4: memref<128x256xf32, #tpu.memory_space<vmem>>, %arg5: memref<1x256xf32, #tpu.memory_space<vmem>>, %arg6: memref<8x256xf32, #tpu.memory_space<vmem>>) attributes {dimension_semantics = [#tpu.dimension_semantics<parallel>], iteration_bounds = array<i64: 1>, scalar_prefetch = 0 : i64, scratch_operands = 0 : i64, tpu.core_type = #tpu.core_type<tc>, window_params = [{transform_indices = @transform_0, window_bounds = array<i64: 8, 256>}, {pipeline_mode = #tpu.pipeline_mode<synchronous>, transform_indices = @transform_1, window_bounds = array<i64: 256, 128>}, {pipeline_mode = #tpu.pipeline_mode<synchronous>, transform_indices = @transform_2, window_bounds = array<i64: 1, 128>}, {pipeline_mode = #tpu.pipeline_mode<synchronous>, transform_indices = @transform_3, window_bounds = array<i64: 128, 256>}, {pipeline_mode = #tpu.pipeline_mode<synchronous>, transform_indices = @transform_4, window_bounds = array<i64: 1, 256>}, {transform_indices = @transform_5, window_bounds = array<i64: 8, 256>}]} {
    %c0 = arith.constant 0 : index
    %c0_0 = arith.constant 0 : index
    %0 = vector.load %arg1[%c0, %c0_0] : memref<8x256xf32, #tpu.memory_space<vmem>>, vector<8x256xf32>
    %c0_1 = arith.constant 0 : index
    %c0_2 = arith.constant 0 : index
    %1 = vector.load %arg2[%c0_1, %c0_2] : memref<256x128xf32, #tpu.memory_space<vmem>>, vector<256x128xf32>
    %cst = arith.constant dense<0.000000e+00> : vector<8x128xf32>
    %2 = tpu.matmul %0, %1, %cst {dimension_numbers = #tpu.dot_dimension_numbers<[1], [0], [0], [1], [0, 0, 1, 1], [], []>} : vector<8x256xf32>, vector<256x128xf32>, vector<8x128xf32> -> vector<8x128xf32>
    %c0_3 = arith.constant 0 : index
    %c0_4 = arith.constant 0 : index
    %3 = vector.load %arg3[%c0_3, %c0_4] : memref<1x128xf32, #tpu.memory_space<vmem>>, vector<1x128xf32>
    %4 = vector.broadcast %3 : vector<1x128xf32> to vector<8x128xf32>
    %5 = arith.addf %2, %4 : vector<8x128xf32>
    %6 = arith.negf %5 : vector<8x128xf32>
    %7 = math.exp %6 : vector<8x128xf32>
    %cst_5 = arith.constant 1.000000e+00 : f32
    %8 = vector.broadcast %cst_5 : f32 to vector<8x128xf32>
    %9 = arith.addf %8, %7 : vector<8x128xf32>
    %10 = arith.divf %8, %9 : vector<8x128xf32>
    %c0_6 = arith.constant 0 : index
    %c0_7 = arith.constant 0 : index
    %11 = vector.load %arg4[%c0_6, %c0_7] : memref<128x256xf32, #tpu.memory_space<vmem>>, vector<128x256xf32>
    %cst_8 = arith.constant dense<0.000000e+00> : vector<8x256xf32>
    %12 = tpu.matmul %10, %11, %cst_8 {dimension_numbers = #tpu.dot_dimension_numbers<[1], [0], [0], [1], [0, 0, 1, 1], [], []>} : vector<8x128xf32>, vector<128x256xf32>, vector<8x256xf32> -> vector<8x256xf32>
    %c0_9 = arith.constant 0 : index
    %c0_10 = arith.constant 0 : index
    %13 = vector.load %arg5[%c0_9, %c0_10] : memref<1x256xf32, #tpu.memory_space<vmem>>, vector<1x256xf32>
    %14 = vector.broadcast %13 : vector<1x256xf32> to vector<8x256xf32>
    %15 = arith.addf %12, %14 : vector<8x256xf32>
    %c0_11 = arith.constant 0 : index
    %c0_12 = arith.constant 0 : index
    %16 = vector.load %arg6[%c0_11, %c0_12] : memref<8x256xf32, #tpu.memory_space<vmem>>, vector<8x256xf32>
    tpu.vector_store %arg6[%c0_11, %c0_12], %15 {strides = array<i32>} : memref<8x256xf32, #tpu.memory_space<vmem>>, vector<8x256xf32>,
    return
  }
  func.func @transform_0(%arg0: i32) -> (i32, i32) {
    %c0_i32 = arith.constant 0 : i32
    %c0_i32_0 = arith.constant 0 : i32
    return %arg0, %c0_i32 : i32, i32
  }
  func.func @transform_1(%arg0: i32) -> (i32, i32) {
    %c0_i32 = arith.constant 0 : i32
    %c0_i32_0 = arith.constant 0 : i32
    %c0_i32_1 = arith.constant 0 : i32
    return %c0_i32, %c0_i32_0 : i32, i32
  }
  func.func @transform_2(%arg0: i32) -> (i32, i32) {
    %c0_i32 = arith.constant 0 : i32
    %c0_i32_0 = arith.constant 0 : i32
    %c0_i32_1 = arith.constant 0 : i32
    return %c0_i32, %c0_i32_0 : i32, i32
  }
  func.func @transform_3(%arg0: i32) -> (i32, i32) {
    %c0_i32 = arith.constant 0 : i32
    %c0_i32_0 = arith.constant 0 : i32
    %c0_i32_1 = arith.constant 0 : i32
    return %c0_i32, %c0_i32_0 : i32, i32
  }
  func.func @transform_4(%arg0: i32) -> (i32, i32) {
    %c0_i32 = arith.constant 0 : i32
    %c0_i32_0 = arith.constant 0 : i32
    %c0_i32_1 = arith.constant 0 : i32
    return %c0_i32, %c0_i32_0 : i32, i32
  }
  func.func @transform_5(%arg0: i32) -> (i32, i32) {
    %c0_i32 = arith.constant 0 : i32
    %c0_i32_0 = arith.constant 0 : i32
    return %arg0, %c0_i32 : i32, i32
  }
}

</mosaic_0001>

<llo_original>
// kernel: tpu_custom_call.1
$region0: #{tpu_custom_call.1}
  #allocation0 [shape = 'u32[]', space=smem, size = 0x4, offset = 0x4, fixed_abs, tag = 'smem constant byte address 0x4 - core index']
  #allocation1 [shape = 'u32[72,128]{1,0:T(1,128)}', space=vmem, size = 0x9000, scoped, tag = 'internal scratch']
  %s0 = inlined_call_operand.hbm [shape: f32[8,256], index: 0, kind: input, shape index: {}]
  %s1 = inlined_call_operand.hbm [shape: f32[256,128], index: 1, kind: input, shape index: {}]
  %s2 = inlined_call_operand.vmem [shape: f32[1,128], index: 2, kind: input, shape index: {}]
  %s3 = inlined_call_operand.hbm [shape: f32[128,256], index: 3, kind: input, shape index: {}]
  %s4 = inlined_call_operand.vmem [shape: f32[1,256], index: 4, kind: input, shape index: {}]
  %s5 = inlined_call_operand.hbm [shape: f32[8,256], index: 5, kind: output, shape index: {}]
  %s6 = sld [smem:[#allocation0]]
  $region42: #{tpu_custom_call.1} parent=0
    _
  %s8 = ssub.s32 1, %s6
  %s9 = scalar_select 0, %s8, %s6
  $region1: #{tpu_custom_call.1} parent=0
    #allocation2 [shape = 'u8[8192]{0}', space=vmem, size = 0x2000, scoped, tag = 'input window, operand 0, single buffered']
    #allocation3 [shape = 's32[1]{0}', space=sflag, size = 0x4, scoped, tag = 'scoped memory for tpu_custom_call.1']
    #allocation4 [shape = 's32[1]{0}', space=sflag, size = 0x4, scoped, tag = 'scoped memory for tpu_custom_call.1']
    #allocation5 [shape = 'u8[131072]{0}', space=vmem, size = 0x20000, scoped, tag = 'input window, operand 1, single buffered']
    #allocation6 [shape = 's32[1]{0}', space=sflag, size = 0x4, scoped, tag = 'scoped memory for tpu_custom_call.1']
    #allocation7 [shape = 'u8[131072]{0}', space=vmem, size = 0x20000, scoped, tag = 'input window, operand 3, single buffered']
    #allocation8 [shape = 'u8[8192]{0}', space=vmem, size = 0x2000, scoped, tag = 'output window, operand 0, single buffered']
    %10 = vsyncpa [#allocation3], 0
    %11 = vsyncpa [#allocation6], 0
    %12 = vsyncpa [#allocation4], 0
    // Predicated region
    $region2: #{tpu_custom_call.1} parent=1 // pred_check
      _
    $region3: #{tpu_custom_call.1} parent=1 // pred_check_branch
      %14 = sbr.rel (0) target = $region5
    $region4: #{tpu_custom_call.1} parent=1 // pred_region
      %16 = vsyncadd [#allocation3], 0
      %s18 = sshll.u32 %s0, 4
      %s19 = int_to_ptr.hbm [resolvable:$true] %s18
      %s20 = sshll.u32 [#allocation2], 4
      %s21 = int_to_ptr.vmem [resolvable:$true] %s20
      %23 = dma.hbm_to_vmem [thread:$0]  %s19, 256, %s21, [#allocation3]
    $region5: #{tpu_custom_call.1} parent=1 // pred_fallthru
      _
    // Predicated region
    $region6: #{tpu_custom_call.1} parent=1 // pred_check
      _
    $region7: #{tpu_custom_call.1} parent=1 // pred_check_branch
      %25 = sbr.rel (0) target = $region9
    $region8: #{tpu_custom_call.1} parent=1 // pred_region
      %27 = vsyncadd [#allocation6], 0
      %s28 = sshll.u32 %s1, 4
      %s29 = int_to_ptr.hbm [resolvable:$true] %s28
      %s30 = sshll.u32 [#allocation5], 4
      %s31 = int_to_ptr.vmem [resolvable:$true] %s30
      %36 = dma.hbm_to_vmem [thread:$0]  %s29, 4096, %s31, [#allocation6], 128, 128, 8
    $region9: #{tpu_custom_call.1} parent=1 // pred_fallthru
      _
    // Predicated region
    $region10: #{tpu_custom_call.1} parent=1 // pred_check
      _
    $region11: #{tpu_custom_call.1} parent=1 // pred_check_branch
      %38 = sbr.rel (0) target = $region13
    $region12: #{tpu_custom_call.1} parent=1 // pred_region
      _
    $region13: #{tpu_custom_call.1} parent=1 // pred_fallthru
      _
    // Predicated region
    $region14: #{tpu_custom_call.1} parent=1 // pred_check
      _
    $region15: #{tpu_custom_call.1} parent=1 // pred_check_branch
      %40 = sbr.rel (0) target = $region17
    $region16: #{tpu_custom_call.1} parent=1 // pred_region
      %42 = vsyncadd [#allocation6], 0
      %s43 = sshll.u32 %s3, 4
      %s44 = int_to_ptr.hbm [resolvable:$true] %s43
      %s45 = sshll.u32 [#allocation7], 4
      %s46 = int_to_ptr.vmem [resolvable:$true] %s45
      %51 = dma.hbm_to_vmem [thread:$0]  %s44, 4096, %s46, [#allocation6], 256, 256, 16
    $region17: #{tpu_custom_call.1} parent=1 // pred_fallthru
      _
    // Predicated region
    $region18: #{tpu_custom_call.1} parent=1 // pred_check
      _
    $region19: #{tpu_custom_call.1} parent=1 // pred_check_branch
      %53 = sbr.rel (0) target = $region21
    $region20: #{tpu_custom_call.1} parent=1 // pred_region
      _
    $region21: #{tpu_custom_call.1} parent=1 // pred_fallthru
      _
    // Predicated region
    $region22: #{tpu_custom_call.1} parent=1 // pred_check
      _
    $region23: #{tpu_custom_call.1} parent=1 // pred_check_branch
      %55 = sbr.rel (0) target = $region25
    $region24: #{tpu_custom_call.1} parent=1 // pred_region
      %57 = dma.done [#allocation3], 256
    $region25: #{tpu_custom_call.1} parent=1 // pred_fallthru
      _
    // Predicated region
    $region26: #{tpu_custom_call.1} parent=1 // pred_check
      _
    $region27: #{tpu_custom_call.1} parent=1 // pred_check_branch
      %59 = sbr.rel (0) target = $region29
    $region28: #{tpu_custom_call.1} parent=1 // pred_region
      %61 = dma.done [#allocation6], 4096
    $region29: #{tpu_custom_call.1} parent=1 // pred_fallthru
      _
    // Predicated region
    $region30: #{tpu_custom_call.1} parent=1 // pred_check
      _
    $region31: #{tpu_custom_call.1} parent=1 // pred_check_branch
      %63 = sbr.rel (0) target = $region33
    $region32: #{tpu_custom_call.1} parent=1 // pred_region
      %65 = dma.done [#allocation6], 4096
    $region33: #{tpu_custom_call.1} parent=1 // pred_fallthru
      _
    %v66 = vld [vmem:[#allocation2] sm:$0xff]
    %v67 = vld [vmem:[#allocation2 + $0x8] sm:$0xff]
    %v68 = vld [vmem:[#allocation5] sm:$0xff]
    %v69 = vld [vmem:[#allocation5 + $0x8] sm:$0xff]
    %v70 = vld [vmem:[#allocation5 + $0x10] sm:$0xff]
    %v71 = vld [vmem:[#allocation5 + $0x18] sm:$0xff]
    %v72 = vld [vmem:[#allocation5 + $0x20] sm:$0xff]
    %v73 = vld [vmem:[#allocation5 + $0x28] sm:$0xff]
    %v74 = vld [vmem:[#allocation5 + $0x30] sm:$0xff]
    %v75 = vld [vmem:[#allocation5 + $0x38] sm:$0xff]
    %v76 = vld [vmem:[#allocation5 + $0x40] sm:$0xff]
    %v77 = vld [vmem:[#allocation5 + $0x48] sm:$0xff]
    %v78 = vld [vmem:[#allocation5 + $0x50] sm:$0xff]
    %v79 = vld [vmem:[#allocation5 + $0x58] sm:$0xff]
    %v80 = vld [vmem:[#allocation5 + $0x60] sm:$0xff]
    %v81 = vld [vmem:[#allocation5 + $0x68] sm:$0xff]
    %v82 = vld [vmem:[#allocation5 + $0x70] sm:$0xff]
    %v83 = vld [vmem:[#allocation5 + $0x78] sm:$0xff]
    %v84 = vld [vmem:[#allocation5 + $0x80] sm:$0xff]
    %v85 = vld [vmem:[#allocation5 + $0x88] sm:$0xff]
    %v86 = vld [vmem:[#allocation5 + $0x90] sm:$0xff]
    %v87 = vld [vmem:[#allocation5 + $0x98] sm:$0xff]
    %v88 = vld [vmem:[#allocation5 + $0xa0] sm:$0xff]
    %v89 = vld [vmem:[#allocation5 + $0xa8] sm:$0xff]
    %v90 = vld [vmem:[#allocation5 + $0xb0] sm:$0xff]
    %v91 = vld [vmem:[#allocation5 + $0xb8] sm:$0xff]
    %v92 = vld [vmem:[#allocation5 + $0xc0] sm:$0xff]
    %v93 = vld [vmem:[#allocation5 + $0xc8] sm:$0xff]
    %v94 = vld [vmem:[#allocation5 + $0xd0] sm:$0xff]
    %v95 = vld [vmem:[#allocation5 + $0xd8] sm:$0xff]
    %v96 = vld [vmem:[#allocation5 + $0xe0] sm:$0xff]
    %v97 = vld [vmem:[#allocation5 + $0xe8] sm:$0xff]
    %v98 = vld [vmem:[#allocation5 + $0xf0] sm:$0xff]
    %v99 = vld [vmem:[#allocation5 + $0xf8] sm:$0xff]
    %v100 = vld [vmem:[%s2] sm:$0x1]
    %v102 = vperm.slane %v100, 0
    %104 = vmatpush.msra.mxu0 %v83
    %105 = vmatpush.msra.mxu0 %v82
    %106 = vmatpush.msra.mxu0 %v81
    %107 = vmatpush.msra.mxu0 %v80
    %108 = vmatpush.msra.mxu0 %v79
    %109 = vmatpush.msra.mxu0 %v78
    %110 = vmatpush.msra.mxu0 %v77
    %111 = vmatpush.msra.mxu0 %v76
    %112 = vmatpush.msra.mxu0 %v75
    %113 = vmatpush.msra.mxu0 %v74
    %114 = vmatpush.msra.mxu0 %v73
    %115 = vmatpush.msra.mxu0 %v72
    %116 = vmatpush.msra.mxu0 %v71
    %117 = vmatpush.msra.mxu0 %v70
    %118 = vmatpush.msra.mxu0 %v69
    %119 = vmatpush.msra.mxu0 %v68
    %120 = vmatmul.f32.gmra.mxu0 %v66
    %v121 = vpop.f32.mrf.mxu0
    %v122 = vadd.f32 %v102, %v121
    %123 = vdwg.mxu0
    %124 = vmatpush.msra.mxu0 %v99
    %125 = vmatpush.msra.mxu0 %v98
    %126 = vmatpush.msra.mxu0 %v97
    %127 = vmatpush.msra.mxu0 %v96
    %128 = vmatpush.msra.mxu0 %v95
    %129 = vmatpush.msra.mxu0 %v94
    %130 = vmatpush.msra.mxu0 %v93
    %131 = vmatpush.msra.mxu0 %v92
    %132 = vmatpush.msra.mxu0 %v91
    %133 = vmatpush.msra.mxu0 %v90
    %134 = vmatpush.msra.mxu0 %v89
    %135 = vmatpush.msra.mxu0 %v88
    %136 = vmatpush.msra.mxu0 %v87
    %137 = vmatpush.msra.mxu0 %v86
    %138 = vmatpush.msra.mxu0 %v85
    %139 = vmatpush.msra.mxu0 %v84
    %140 = vmatmul.f32.gmra.mxu0 %v67
    %v141 = vpop.f32.mrf.mxu0
    %v142 = vadd.f32 %v122, %v141
    %143 = vdwg.mxu0
    %v144 = vxor.u32 %v142, 2147483648
    %v145 = vmul.f32 %v144, 1.442695
    %v146 = vpow.pop %v145
    %v147 = vadd.f32 %v146, 1.0
    %v148 = vrcp.pop %v147
    %v149 = vmul.f32 %v147, %v148
    %v150 = vsub.f32 1.0, %v149
    %v151 = vmul.f32 %v148, %v150
    %v152 = vadd.f32 %v148, %v151
    %vm153 = vweird.f32 %v147
    %vm154 = vweird.f32 %v148
    %vm155 = vmor %vm153, %vm154
    %v156 = vsel %vm155, %v148, %v152
    %v157 = vand.u32 2147483647, %v147
    %vm158 = vcmp.eq.f32.partialorder %v157, 8.507059e+37
    %v159 = vand.u32 %v147, 2147483648
    %v160 = vor.u32 1.1754944e-38, %v159
    %v161 = vsel %vm158, %v160, %v156
    %v162 = vmul.f32 1.0, %v161
    %v163 = vld [vmem:[#allocation7] sm:$0xff]
    %v164 = vld [vmem:[#allocation7 + $0x8] sm:$0xff]
    %v165 = vld [vmem:[#allocation7 + $0x10] sm:$0xff]
    %v166 = vld [vmem:[#allocation7 + $0x18] sm:$0xff]
    %v167 = vld [vmem:[#allocation7 + $0x20] sm:$0xff]
    %v168 = vld [vmem:[#allocation7 + $0x28] sm:$0xff]
    %v169 = vld [vmem:[#allocation7 + $0x30] sm:$0xff]
    %v170 = vld [vmem:[#allocation7 + $0x38] sm:$0xff]
    %v171 = vld [vmem:[#allocation7 + $0x40] sm:$0xff]
    %v172 = vld [vmem:[#allocation7 + $0x48] sm:$0xff]
    %v173 = vld [vmem:[#allocation7 + $0x50] sm:$0xff]
    %v174 = vld [vmem:[#allocation7 + $0x58] sm:$0xff]
    %v175 = vld [vmem:[#allocation7 + $0x60] sm:$0xff]
    %v176 = vld [vmem:[#allocation7 + $0x68] sm:$0xff]
    %v177 = vld [vmem:[#allocation7 + $0x70] sm:$0xff]
    %v178 = vld [vmem:[#allocation7 + $0x78] sm:$0xff]
    %v179 = vld [vmem:[#allocation7 + $0x80] sm:$0xff]
    %v180 = vld [vmem:[#allocation7 + $0x88] sm:$0xff]
    %v181 = vld [vmem:[#allocation7 + $0x90] sm:$0xff]
    %v182 = vld [vmem:[#allocation7 + $0x98] sm:$0xff]
    %v183 = vld [vmem:[#allocation7 + $0xa0] sm:$0xff]
    %v184 = vld [vmem:[#allocation7 + $0xa8] sm:$0xff]
    %v185 = vld [vmem:[#allocation7 + $0xb0] sm:$0xff]
    %v186 = vld [vmem:[#allocation7 + $0xb8] sm:$0xff]
    %v187 = vld [vmem:[#allocation7 + $0xc0] sm:$0xff]
    %v188 = vld [vmem:[#allocation7 + $0xc8] sm:$0xff]
    %v189 = vld [vmem:[#allocation7 + $0xd0] sm:$0xff]
    %v190 = vld [vmem:[#allocation7 + $0xd8] sm:$0xff]
    %v191 = vld [vmem:[#allocation7 + $0xe0] sm:$0xff]
    %v192 = vld [vmem:[#allocation7 + $0xe8] sm:$0xff]
    %v193 = vld [vmem:[#allocation7 + $0xf0] sm:$0xff]
    %v194 = vld [vmem:[#allocation7 + $0xf8] sm:$0xff]
    %v195 = vld [vmem:[%s4] sm:$0x3]
    %v197 = vperm.slane %v195, 0
    %v198 = vperm.slane %v195, 1
    %201 = vmatpush.msra.mxu0 %v193
    %202 = vmatpush.msra.mxu0 %v191
    %203 = vmatpush.msra.mxu0 %v189
    %204 = vmatpush.msra.mxu0 %v187
    %205 = vmatpush.msra.mxu0 %v185
    %206 = vmatpush.msra.mxu0 %v183
    %207 = vmatpush.msra.mxu0 %v181
    %208 = vmatpush.msra.mxu0 %v179
    %209 = vmatpush.msra.mxu0 %v177
    %210 = vmatpush.msra.mxu0 %v175
    %211 = vmatpush.msra.mxu0 %v173
    %212 = vmatpush.msra.mxu0 %v171
    %213 = vmatpush.msra.mxu0 %v169
    %214 = vmatpush.msra.mxu0 %v167
    %215 = vmatpush.msra.mxu0 %v165
    %216 = vmatpush.msra.mxu0 %v163
    %217 = vmatmul.f32.gmra.mxu0 %v162
    %v218 = vpop.f32.mrf.mxu0
    %v219 = vadd.f32 %v197, %v218
    %220 = vdwg.mxu0
    %221 = vmatpush.msra.mxu0 %v194
    %222 = vmatpush.msra.mxu0 %v192
    %223 = vmatpush.msra.mxu0 %v190
    %224 = vmatpush.msra.mxu0 %v188
    %225 = vmatpush.msra.mxu0 %v186
    %226 = vmatpush.msra.mxu0 %v184
    %227 = vmatpush.msra.mxu0 %v182
    %228 = vmatpush.msra.mxu0 %v180
    %229 = vmatpush.msra.mxu0 %v178
    %230 = vmatpush.msra.mxu0 %v176
    %231 = vmatpush.msra.mxu0 %v174
    %232 = vmatpush.msra.mxu0 %v172
    %233 = vmatpush.msra.mxu0 %v170
    %234 = vmatpush.msra.mxu0 %v168
    %235 = vmatpush.msra.mxu0 %v166
    %236 = vmatpush.msra.mxu0 %v164
    %237 = vmatmul.f32.gmra.mxu0 %v162
    %v238 = vpop.f32.mrf.mxu0
    %v239 = vadd.f32 %v198, %v238
    %240 = vdwg.mxu0
    %241 = vst [vmem:[#allocation8] sm:$0xff] %v219
    %242 = vst [vmem:[#allocation8 + $0x8] sm:$0xff] %v239
    // Predicated region
    $region34: #{tpu_custom_call.1} parent=1 // pred_check
      _
    $region35: #{tpu_custom_call.1} parent=1 // pred_check_branch
      %244 = sbr.rel (0) target = $region37
    $region36: #{tpu_custom_call.1} parent=1 // pred_region
      %246 = vsyncadd [#allocation4], 0
      %s248 = sshll.u32 [#allocation8], 4
      %s249 = int_to_ptr.vmem [resolvable:$true] %s248
      %s250 = sshll.u32 %s5, 4
      %s251 = int_to_ptr.hbm [resolvable:$true] %s250
      %253 = dma.vmem_to_hbm [thread:$0]  %s249, 256, %s251, [#allocation4]
    $region37: #{tpu_custom_call.1} parent=1 // pred_fallthru
      _
    // Predicated region
    $region38: #{tpu_custom_call.1} parent=1 // pred_check
      _
    $region39: #{tpu_custom_call.1} parent=1 // pred_check_branch
      %255 = sbr.rel (0) target = $region41
    $region40: #{tpu_custom_call.1} parent=1 // pred_region
      %257 = dma.done [#allocation4], 256
    $region41: #{tpu_custom_call.1} parent=1 // pred_fallthru
      _
    %258 = vsyncpa [#allocation3], 1
    %259 = vsyncpa [#allocation6], 1
    %260 = vsyncpa [#allocation4], 1

</llo_original>
